<compile_context>
chip_gen: v7x
topology: tpu7x:2x2x1
jax: 0.10.0
libtpu: 0.0.40
codegen_flags: <defaults>
</compile_context>

<pallas_src>
import jax
import jax.numpy as jnp
from jax.experimental import pallas as pl
from jax.experimental.pallas import tpu as pltpu

# bf16 MXU operands / f32 accumulation (v6e/v7x recommendation). Use
# jnp.float32 here for exact parity with the f32 PyTorch forward.
_MATMUL_DTYPE = jnp.bfloat16
_LANE = 128


def gcn_perturb_kernel(p_symm_ref, sub_adj_ref, x_ref, w1_ref, b1_ref,
                       w2_ref, b2_ref, out_ref, p_used_ref):
    # Edge mask: sigmoid of the symmetric perturbation parameters.
    # (Diagonal is sigmoid(0)=0.5, same as the torch reference; sub_adj's zero
    #  diagonal removes it from adj.)
    p_used = jax.nn.sigmoid(p_symm_ref[...])
    p_used_ref[...] = p_used

    # Delete-only masked adjacency.
    adj = p_used * sub_adj_ref[...]

    # Degree including self-loop: rowsum(adj) + 1. Single reduce; A_hat is
    # never materialized. (At large N this could ride the MXU via adj @ ones.)
    deg = jnp.sum(adj, axis=1, keepdims=True) + 1.0            # [N, 1]
    dinv = jax.lax.rsqrt(deg)                                   # D^-1/2, [N, 1]

    adj_m = adj.astype(_MATMUL_DTYPE)

    # Layer 1: relu( D^-1/2 (A + I) D^-1/2 (X @ W1) + b1 ), norm folded into rows.
    xw1 = jnp.dot(x_ref[...].astype(_MATMUL_DTYPE),
                  w1_ref[...].astype(_MATMUL_DTYPE),
                  preferred_element_type=jnp.float32)
    z1 = dinv * xw1
    a1 = jnp.dot(adj_m, z1.astype(_MATMUL_DTYPE),
                 preferred_element_type=jnp.float32) + z1       # (adj + I) @ z1
    h1 = jnp.maximum(dinv * a1 + b1_ref[...], 0.0)

    # Layer 2: D^-1/2 (A + I) D^-1/2 (H1 @ W2) + b2.
    hw2 = jnp.dot(h1.astype(_MATMUL_DTYPE),
                  w2_ref[...].astype(_MATMUL_DTYPE),
                  preferred_element_type=jnp.float32)
    z2 = dinv * hw2
    a2 = jnp.dot(adj_m, z2.astype(_MATMUL_DTYPE),
                 preferred_element_type=jnp.float32) + z2
    out_ref[...] = dinv * a2 + b2_ref[...]


def make_symm_gather_index(n):
    """int32 [N, N] gather table: (i, j) -> row-major strict-lower-tri linear
    index of P_vec (same ordering as tril_indices(n, -1)); diagonal maps to the
    padded zero slot n*(n-1)/2. Built once, outside the optimization loop."""
    i = jnp.arange(n, dtype=jnp.int32)[:, None]
    j = jnp.arange(n, dtype=jnp.int32)[None, :]
    lo = jnp.minimum(i, j)
    hi = jnp.maximum(i, j)
    lin = (hi * (hi - 1)) // 2 + lo
    n_vec = n * (n - 1) // 2
    return jnp.where(i == j, n_vec, lin).astype(jnp.int32)


@jax.jit
def gcn_perturb_forward_batch(p_vec_batch, sub_adj, x, w1, b1, w2, b2, symm_idx):
    """Batched forward: evaluates B independent mask candidates on one graph."""
    bsz, _ = p_vec_batch.shape
    n = sub_adj.shape[0]
    f_in = x.shape[1]
    hidden = w1.shape[1]
    f_out = w2.shape[1]
    fout_p = max(_LANE, -(-f_out // _LANE) * _LANE)   # pad out channels to 128 lanes

    # P_symm via gather (vectorizable), not scatter: pad P_vec with one zero
    # slot that the diagonal indices point to.
    p_vec_pad = jnp.concatenate(
        [p_vec_batch, jnp.zeros((bsz, 1), p_vec_batch.dtype)], axis=-1)
    p_symm = jnp.take(p_vec_pad, symm_idx, axis=-1)            # [B, N, N]

    # Lane-dense output: pad W2/b2 to 128 output lanes, slice after the call.
    w2_p = jnp.pad(w2, ((0, 0), (0, fout_p - f_out)))
    b2_p = jnp.pad(b2, ((0, 0), (0, fout_p - f_out)))

    out_shapes = (
        jax.ShapeDtypeStruct((bsz, n, fout_p), jnp.float32),   # padded GCN output
        jax.ShapeDtypeStruct((bsz, n, n), jnp.float32),        # P_used
    )
    grid_spec = pltpu.PrefetchScalarGridSpec(
        num_scalar_prefetch=0,
        grid=(bsz,),
        in_specs=[
            pl.BlockSpec((None, n, n), lambda b: (b, 0, 0)),     # P_symm (per candidate)
            pl.BlockSpec((n, n), lambda b: (0, 0)),              # sub_adj (shared)
            pl.BlockSpec((n, f_in), lambda b: (0, 0)),           # x
            pl.BlockSpec((f_in, hidden), lambda b: (0, 0)),      # w1
            pl.BlockSpec((1, hidden), lambda b: (0, 0)),         # b1
            pl.BlockSpec((hidden, fout_p), lambda b: (0, 0)),    # w2 (padded)
            pl.BlockSpec((1, fout_p), lambda b: (0, 0)),         # b2 (padded)
        ],
        out_specs=[
            pl.BlockSpec((None, n, fout_p), lambda b: (b, 0, 0)),
            pl.BlockSpec((None, n, n), lambda b: (b, 0, 0)),
        ],
    )
    out_p, p_used = pl.pallas_call(
        gcn_perturb_kernel,
        out_shape=out_shapes,
        grid_spec=grid_spec,
        compiler_params=pltpu.CompilerParams(
            dimension_semantics=("parallel",),       # megacore / v7x 2-TC sharding
            vmem_limit_bytes=64 * 1024 * 1024,       # v5e default scoped limit is 16 MiB
        ),
    )(p_symm, sub_adj, x, w1, b1, w2_p, b2_p)
    return out_p[:, :, :f_out], p_used


def gcn_perturb_forward(p_vec, sub_adj, x, w1, b1, w2, b2, symm_idx):
    """Single-candidate forward matching the module's forward(x) -> (out, P_used)."""
    out, p_used = gcn_perturb_forward_batch(
        p_vec[None], sub_adj, x, w1, b1, w2, b2, symm_idx)
    return out[0], p_used[0]


if __name__ == "__main__":
    key = jax.random.PRNGKey(0)
    n = 16                      # num_nodes
    f_in, hidden, f_out = 32, 32, 8
    num_candidates = 4          # mask candidates batched onto the grid axis

    k1, k2, k3, k4, k5 = jax.random.split(key, 5)

    # Deterministic symmetric binary sub_adj with zero diagonal.
    a = (jax.random.uniform(k1, (n, n)) > 0.6).astype(jnp.float32)
    sub_adj = jnp.triu(a, 1)
    sub_adj = sub_adj + sub_adj.T

    # Node features.
    x = jax.random.normal(k2, (n, f_in), jnp.float32)

    # Frozen GCN weights (synthetic, deterministic).
    w1 = jax.random.normal(k3, (f_in, hidden), jnp.float32) / jnp.sqrt(
        jnp.float32(f_in))
    b1 = jnp.zeros((1, hidden), jnp.float32)
    w2 = jax.random.normal(k4, (hidden, f_out), jnp.float32) / jnp.sqrt(
        jnp.float32(hidden))
    b2 = jnp.zeros((1, f_out), jnp.float32)

    # Gather table built once (replaces the per-step XLA scatter).
    symm_idx = make_symm_gather_index(n)

    # Candidate 0 reproduces reset_parameters(): P_vec = 0 - eps. The rest are
    # extra perturbation candidates evaluated in the same batched call.
    n_vec = n * (n - 1) // 2
    p_vec0 = jnp.zeros((n_vec,), jnp.float32) - 1e-4
    p_rand = 0.1 * jax.random.normal(k5, (num_candidates - 1, n_vec), jnp.float32)
    p_vec_batch = jnp.concatenate([p_vec0[None], p_rand], axis=0)

    out_b, p_used_b = gcn_perturb_forward_batch(
        p_vec_batch, sub_adj, x, w1, b1, w2, b2, symm_idx)
    jax.block_until_ready((out_b, p_used_b))
    assert out_b.shape == (num_candidates, n, f_out)
    assert p_used_b.shape == (num_candidates, n, n)

    # Single-candidate call matching the original module's forward().
    out, p_used = gcn_perturb_forward(p_vec0, sub_adj, x, w1, b1, w2, b2, symm_idx)
    jax.block_until_ready((out, p_used))
    assert out.shape == (n, f_out) and p_used.shape == (n, n)

    print("KERNEL_OK")
</pallas_src>

<mosaic_0001>
module attributes {stable_mosaic.version = 11 : i64} {
  func.func @gcn_perturb_kernel(%arg0: i32, %arg1: memref<1x16x16xf32, #tpu.memory_space<vmem>>, %arg2: memref<16x16xf32, #tpu.memory_space<vmem>>, %arg3: memref<16x32xf32, #tpu.memory_space<vmem>>, %arg4: memref<32x32xf32, #tpu.memory_space<vmem>>, %arg5: memref<1x32xf32, #tpu.memory_space<vmem>>, %arg6: memref<32x128xf32, #tpu.memory_space<vmem>>, %arg7: memref<1x128xf32, #tpu.memory_space<vmem>>, %arg8: memref<1x16x128xf32, #tpu.memory_space<vmem>>, %arg9: memref<1x16x16xf32, #tpu.memory_space<vmem>>) attributes {dimension_semantics = [#tpu.dimension_semantics<parallel>], iteration_bounds = array<i64: 4>, scalar_prefetch = 0 : i64, scratch_operands = 0 : i64, tpu.core_type = #tpu.core_type<tc>, window_params = [{transform_indices = @transform_0, window_bounds = array<i64: 1, 16, 16>}, {pipeline_mode = #tpu.pipeline_mode<synchronous>, transform_indices = @transform_1, window_bounds = array<i64: 16, 16>}, {pipeline_mode = #tpu.pipeline_mode<synchronous>, transform_indices = @transform_2, window_bounds = array<i64: 16, 32>}, {pipeline_mode = #tpu.pipeline_mode<synchronous>, transform_indices = @transform_3, window_bounds = array<i64: 32, 32>}, {pipeline_mode = #tpu.pipeline_mode<synchronous>, transform_indices = @transform_4, window_bounds = array<i64: 1, 32>}, {pipeline_mode = #tpu.pipeline_mode<synchronous>, transform_indices = @transform_5, window_bounds = array<i64: 32, 128>}, {pipeline_mode = #tpu.pipeline_mode<synchronous>, transform_indices = @transform_6, window_bounds = array<i64: 1, 128>}, {transform_indices = @transform_7, window_bounds = array<i64: 1, 16, 128>}, {transform_indices = @transform_8, window_bounds = array<i64: 1, 16, 16>}]} {
    %c0 = arith.constant 0 : index
    %c0_0 = arith.constant 0 : index
    %c0_1 = arith.constant 0 : index
    %0 = vector.load %arg1[%c0, %c0_0, %c0_1] : memref<1x16x16xf32, #tpu.memory_space<vmem>>, vector<1x16x16xf32>
    %1 = vector.shape_cast %0 : vector<1x16x16xf32> to vector<16x16xf32>
    %2 = arith.negf %1 : vector<16x16xf32>
    %3 = math.exp %2 : vector<16x16xf32>
    %cst = arith.constant 1.000000e+00 : f32
    %4 = vector.broadcast %cst : f32 to vector<16x16xf32>
    %5 = arith.addf %4, %3 : vector<16x16xf32>
    %6 = arith.divf %4, %5 : vector<16x16xf32>
    %c0_2 = arith.constant 0 : index
    %c0_3 = arith.constant 0 : index
    %c0_4 = arith.constant 0 : index
    %7 = vector.load %arg9[%c0_2, %c0_3, %c0_4] : memref<1x16x16xf32, #tpu.memory_space<vmem>>, vector<1x16x16xf32>
    %8 = vector.shape_cast %7 : vector<1x16x16xf32> to vector<16x16xf32>
    %9 = vector.shape_cast %6 : vector<16x16xf32> to vector<1x16x16xf32>
    tpu.vector_store %arg9[%c0_2, %c0_3, %c0_4], %9 {strides = array<i32>} : memref<1x16x16xf32, #tpu.memory_space<vmem>>, vector<1x16x16xf32>,
    %c0_5 = arith.constant 0 : index
    %c0_6 = arith.constant 0 : index
    %10 = vector.load %arg2[%c0_5, %c0_6] : memref<16x16xf32, #tpu.memory_space<vmem>>, vector<16x16xf32>
    %11 = arith.mulf %6, %10 : vector<16x16xf32>
    %cst_7 = arith.constant dense<0.000000e+00> : vector<16xf32>
    %12 = vector.multi_reduction <add>, %11, %cst_7 [1] : vector<16x16xf32> to vector<16xf32>
    %13 = vector.shape_cast %12 : vector<16xf32> to vector<16x1xf32>
    %cst_8 = arith.constant 1.000000e+00 : f32
    %14 = vector.broadcast %cst_8 : f32 to vector<16x1xf32>
    %15 = arith.addf %13, %14 : vector<16x1xf32>
    %16 = math.rsqrt %15 : vector<16x1xf32>
    %17 = arith.truncf %11 : vector<16x16xf32> to vector<16x16xbf16>
    %c0_9 = arith.constant 0 : index
    %c0_10 = arith.constant 0 : index
    %18 = vector.load %arg3[%c0_9, %c0_10] : memref<16x32xf32, #tpu.memory_space<vmem>>, vector<16x32xf32>
    %19 = arith.truncf %18 : vector<16x32xf32> to vector<16x32xbf16>
    %c0_11 = arith.constant 0 : index
    %c0_12 = arith.constant 0 : index
    %20 = vector.load %arg4[%c0_11, %c0_12] : memref<32x32xf32, #tpu.memory_space<vmem>>, vector<32x32xf32>
    %21 = arith.truncf %20 : vector<32x32xf32> to vector<32x32xbf16>
    %cst_13 = arith.constant dense<0.000000e+00> : vector<16x32xf32>
    %22 = tpu.matmul %19, %21, %cst_13 {dimension_numbers = #tpu.dot_dimension_numbers<[1], [0], [0], [1], [0, 0, 1, 1], [], []>} : vector<16x32xbf16>, vector<32x32xbf16>, vector<16x32xf32> -> vector<16x32xf32>
    %23 = vector.broadcast %16 : vector<16x1xf32> to vector<16x32xf32>
    %24 = arith.mulf %23, %22 : vector<16x32xf32>
    %25 = arith.truncf %24 : vector<16x32xf32> to vector<16x32xbf16>
    %cst_14 = arith.constant dense<0.000000e+00> : vector<16x32xf32>
    %26 = tpu.matmul %17, %25, %cst_14 {dimension_numbers = #tpu.dot_dimension_numbers<[1], [0], [0], [1], [0, 0, 1, 1], [], []>} : vector<16x16xbf16>, vector<16x32xbf16>, vector<16x32xf32> -> vector<16x32xf32>
    %27 = arith.addf %26, %24 : vector<16x32xf32>
    %28 = vector.broadcast %16 : vector<16x1xf32> to vector<16x32xf32>
    %29 = arith.mulf %28, %27 : vector<16x32xf32>
    %c0_15 = arith.constant 0 : index
    %c0_16 = arith.constant 0 : index
    %30 = vector.load %arg5[%c0_15, %c0_16] : memref<1x32xf32, #tpu.memory_space<vmem>>, vector<1x32xf32>
    %31 = vector.broadcast %30 : vector<1x32xf32> to vector<16x32xf32>
    %32 = arith.addf %29, %31 : vector<16x32xf32>
    %cst_17 = arith.constant 0.000000e+00 : f32
    %33 = vector.broadcast %cst_17 : f32 to vector<16x32xf32>
    %34 = arith.maximumf %32, %33 : vector<16x32xf32>
    %35 = arith.truncf %34 : vector<16x32xf32> to vector<16x32xbf16>
    %c0_18 = arith.constant 0 : index
    %c0_19 = arith.constant 0 : index
    %36 = vector.load %arg6[%c0_18, %c0_19] : memref<32x128xf32, #tpu.memory_space<vmem>>, vector<32x128xf32>
    %37 = arith.truncf %36 : vector<32x128xf32> to vector<32x128xbf16>
    %cst_20 = arith.constant dense<0.000000e+00> : vector<16x128xf32>
    %38 = tpu.matmul %35, %37, %cst_20 {dimension_numbers = #tpu.dot_dimension_numbers<[1], [0], [0], [1], [0, 0, 1, 1], [], []>} : vector<16x32xbf16>, vector<32x128xbf16>, vector<16x128xf32> -> vector<16x128xf32>
    %39 = vector.broadcast %16 : vector<16x1xf32> to vector<16x128xf32>
    %40 = arith.mulf %39, %38 : vector<16x128xf32>
    %41 = arith.truncf %40 : vector<16x128xf32> to vector<16x128xbf16>
    %cst_21 = arith.constant dense<0.000000e+00> : vector<16x128xf32>
    %42 = tpu.matmul %17, %41, %cst_21 {dimension_numbers = #tpu.dot_dimension_numbers<[1], [0], [0], [1], [0, 0, 1, 1], [], []>} : vector<16x16xbf16>, vector<16x128xbf16>, vector<16x128xf32> -> vector<16x128xf32>
    %43 = arith.addf %42, %40 : vector<16x128xf32>
    %44 = vector.broadcast %16 : vector<16x1xf32> to vector<16x128xf32>
    %45 = arith.mulf %44, %43 : vector<16x128xf32>
    %c0_22 = arith.constant 0 : index
    %c0_23 = arith.constant 0 : index
    %46 = vector.load %arg7[%c0_22, %c0_23] : memref<1x128xf32, #tpu.memory_space<vmem>>, vector<1x128xf32>
    %47 = vector.broadcast %46 : vector<1x128xf32> to vector<16x128xf32>
    %48 = arith.addf %45, %47 : vector<16x128xf32>
    %c0_24 = arith.constant 0 : index
    %c0_25 = arith.constant 0 : index
    %c0_26 = arith.constant 0 : index
    %49 = vector.load %arg8[%c0_24, %c0_25, %c0_26] : memref<1x16x128xf32, #tpu.memory_space<vmem>>, vector<1x16x128xf32>
    %50 = vector.shape_cast %49 : vector<1x16x128xf32> to vector<16x128xf32>
    %51 = vector.shape_cast %48 : vector<16x128xf32> to vector<1x16x128xf32>
    tpu.vector_store %arg8[%c0_24, %c0_25, %c0_26], %51 {strides = array<i32>} : memref<1x16x128xf32, #tpu.memory_space<vmem>>, vector<1x16x128xf32>,
    return
  }
  func.func @transform_0(%arg0: i32) -> (i32, i32, i32) {
    %c0_i32 = arith.constant 0 : i32
    %c0_i32_0 = arith.constant 0 : i32
    %c0_i32_1 = arith.constant 0 : i32
    return %arg0, %c0_i32, %c0_i32_0 : i32, i32, i32
  }
  func.func @transform_1(%arg0: i32) -> (i32, i32) {
    %c0_i32 = arith.constant 0 : i32
    %c0_i32_0 = arith.constant 0 : i32
    %c0_i32_1 = arith.constant 0 : i32
    return %c0_i32, %c0_i32_0 : i32, i32
  }
  func.func @transform_2(%arg0: i32) -> (i32, i32) {
    %c0_i32 = arith.constant 0 : i32
    %c0_i32_0 = arith.constant 0 : i32
    %c0_i32_1 = arith.constant 0 : i32
    return %c0_i32, %c0_i32_0 : i32, i32
  }
  func.func @transform_3(%arg0: i32) -> (i32, i32) {
    %c0_i32 = arith.constant 0 : i32
    %c0_i32_0 = arith.constant 0 : i32
    %c0_i32_1 = arith.constant 0 : i32
    return %c0_i32, %c0_i32_0 : i32, i32
  }
  func.func @transform_4(%arg0: i32) -> (i32, i32) {
    %c0_i32 = arith.constant 0 : i32
    %c0_i32_0 = arith.constant 0 : i32
    %c0_i32_1 = arith.constant 0 : i32
    return %c0_i32, %c0_i32_0 : i32, i32
  }
  func.func @transform_5(%arg0: i32) -> (i32, i32) {
    %c0_i32 = arith.constant 0 : i32
    %c0_i32_0 = arith.constant 0 : i32
    %c0_i32_1 = arith.constant 0 : i32
    return %c0_i32, %c0_i32_0 : i32, i32
  }
  func.func @transform_6(%arg0: i32) -> (i32, i32) {
    %c0_i32 = arith.constant 0 : i32
    %c0_i32_0 = arith.constant 0 : i32
    %c0_i32_1 = arith.constant 0 : i32
    return %c0_i32, %c0_i32_0 : i32, i32
  }
  func.func @transform_7(%arg0: i32) -> (i32, i32, i32) {
    %c0_i32 = arith.constant 0 : i32
    %c0_i32_0 = arith.constant 0 : i32
    %c0_i32_1 = arith.constant 0 : i32
    return %arg0, %c0_i32, %c0_i32_0 : i32, i32, i32
  }
  func.func @transform_8(%arg0: i32) -> (i32, i32, i32) {
    %c0_i32 = arith.constant 0 : i32
    %c0_i32_0 = arith.constant 0 : i32
    %c0_i32_1 = arith.constant 0 : i32
    return %arg0, %c0_i32, %c0_i32_0 : i32, i32, i32
  }
}

</mosaic_0001>

<llo_original>
// kernel: gcn_perturb_forward_batch.1
$region0: #{gcn_perturb_forward_batch.1}
  #allocation0 [shape = 'u32[]', space=smem, size = 0x4, offset = 0x4, fixed_abs, tag = 'smem constant byte address 0x4 - core index']
  #allocation1 [shape = 'u32[144,128]{1,0:T(1,128)}', space=vmem, size = 0x12000, scoped, tag = 'internal scratch']
  %s0 = inlined_call_operand.hbm [shape: f32[4,16,16], index: 0, kind: input, shape index: {}]
  %s1 = inlined_call_operand.hbm [shape: f32[16,16], index: 1, kind: input, shape index: {}]
  %s2 = inlined_call_operand.hbm [shape: f32[16,32], index: 2, kind: input, shape index: {}]
  %s3 = inlined_call_operand.hbm [shape: f32[32,32], index: 3, kind: input, shape index: {}]
  %s4 = inlined_call_operand.hbm [shape: f32[1,32], index: 4, kind: input, shape index: {}]
  %s5 = inlined_call_operand.hbm [shape: f32[32,128], index: 5, kind: input, shape index: {}]
  %s6 = inlined_call_operand.hbm [shape: f32[1,128], index: 6, kind: input, shape index: {}]
  %s7 = inlined_call_operand.hbm [shape: f32[4,16,128], index: 7, kind: output, shape index: {0}]
  %s8 = inlined_call_operand.hbm [shape: f32[4,16,16], index: 8, kind: output, shape index: {1}]
  %9 = xla_tuple %s7, %s8
  %s10 = sld [smem:[#allocation0]]
  $region97: #{gcn_perturb_forward_batch.1} parent=0
    _
  %s12 = ssub.s32 1, %s10
  %s13 = scalar_select 0, %s12, %s10
  $region1: #{gcn_perturb_forward_batch.1} parent=0
    #allocation2 [shape = 'u8[16384]{0}', space=vmem, size = 0x4000, scoped, tag = 'input window, operand 0']
    #allocation3 [shape = 's32[2]{0}', space=sflag, size = 0x8, scoped, tag = 'scoped memory for gcn_perturb_forward_batch.1']
    #allocation4 [shape = 's32[2]{0}', space=sflag, size = 0x8, scoped, tag = 'scoped memory for gcn_perturb_forward_batch.1']
    #allocation5 [shape = 'u8[8192]{0}', space=vmem, size = 0x2000, scoped, tag = 'input window, operand 1, single buffered']
    #allocation6 [shape = 's32[1]{0}', space=sflag, size = 0x4, scoped, tag = 'scoped memory for gcn_perturb_forward_batch.1']
    #allocation7 [shape = 'u8[8192]{0}', space=vmem, size = 0x2000, scoped, tag = 'input window, operand 2, single buffered']
    #allocation8 [shape = 'u8[16384]{0}', space=vmem, size = 0x4000, scoped, tag = 'input window, operand 3, single buffered']
    #allocation9 [shape = 's32[1]{0}', space=sflag, size = 0x4, scoped, tag = 'scoped memory for gcn_perturb_forward_batch.1']
    #allocation10 [shape = 'u8[512]{0}', space=vmem, size = 0x400, scoped, tag = 'input window, operand 4, single buffered']
    #allocation11 [shape = 'u8[16384]{0}', space=vmem, size = 0x4000, scoped, tag = 'input window, operand 5, single buffered']
    #allocation12 [shape = 's32[1]{0}', space=sflag, size = 0x4, scoped, tag = 'scoped memory for gcn_perturb_forward_batch.1']
    #allocation13 [shape = 'u8[512]{0}', space=vmem, size = 0x400, scoped, tag = 'input window, operand 6, single buffered']
    #allocation14 [shape = 'u8[16384]{0}', space=vmem, size = 0x4000, scoped, tag = 'output window, operand 0']
    #allocation15 [shape = 'u8[16384]{0}', space=vmem, size = 0x4000, scoped, tag = 'output window, operand 1']
    #allocation16 [shape = 's32[2]{0}', space=sflag, size = 0x8, scoped, tag = 'scoped memory for gcn_perturb_forward_batch.1']
    %14 = vsyncpa [#allocation3], 0
    %s15 = scalar_lea.sflag [#allocation3], 1
    %16 = vsyncpa %s15, 0
    %17 = vsyncpa [#allocation6], 0
    %18 = vsyncpa [#allocation9], 0
    %19 = vsyncpa [#allocation12], 0
    %20 = vsyncpa [#allocation4], 0
    %s21 = scalar_lea.sflag [#allocation4], 1
    %22 = vsyncpa %s21, 0
    %23 = vsyncpa [#allocation16], 0
    %s24 = scalar_lea.sflag [#allocation16], 1
    %25 = vsyncpa %s24, 0
    loop: start=0, step=1, limit=6
    $region2: #{gcn_perturb_forward_batch.1} parent=1 // loop_pre_header
      _
    $region3: #{gcn_perturb_forward_batch.1} parent=1 // loop_header
      %s27 = sphi 0, %s31
      %p28 = scmp.ge.s32.totalorder %s27, 6
      %s37 = sphi 0, %s39
      %s40 = sphi 0, %s37
      %s41 = sphi 0, %s40
      %s57 = sphi 0, %s41
      %s61 = sphi 0, %s61
      %s63 = sphi 0, %s61
      %s64 = sphi 0, %s63
      %s78 = sphi 0, %s64
      %s82 = sphi 0, %s82
      %s84 = sphi 0, %s82
      %s85 = sphi 0, %s84
      %s99 = sphi 0, %s85
      %s103 = sphi 0, %s103
      %s105 = sphi 0, %s103
      %s106 = sphi 0, %s105
      %s120 = sphi 0, %s106
      %s124 = sphi 0, %s124
      %s126 = sphi 0, %s124
      %s127 = sphi 0, %s126
      %s141 = sphi 0, %s127
      %s145 = sphi 0, %s145
      %s147 = sphi 0, %s145
      %s148 = sphi 0, %s147
      %s162 = sphi 0, %s148
      %s166 = sphi 0, %s166
      %s168 = sphi 0, %s166
      %s169 = sphi 0, %s168
      %s183 = sphi 0, %s169
      %s189 = sphi 0, %s191
      %s192 = sphi 0, %s189
      %s193 = sphi 0, %s192
      %s209 = sphi 0, %s193
      %s215 = sphi 0, %s217
      %s218 = sphi 0, %s215
      %s219 = sphi 0, %s218
      %s235 = sphi 0, %s219
    $region4: #{gcn_perturb_forward_batch.1} parent=1 // loop_header_branch
      %30 = sbr.rel (%p28) target = $region8
    $region5: #{gcn_perturb_forward_batch.1} parent=1 // loop_body
      %s32 = ssub.s32 %s27, 1
      %s33 = ssub.s32 %s27, 2
      %s34 = sadd.s32 %s27, 1
      %s35 = ssub.s32 %s27, %s34
      %p36 = scmp.eq.s32.totalorder %s35, 0
      %s38 = sadd.s32 %s37, 1
      %s39 = scalar_select %p36, %s37, %s38
      %p42 = pneg %p36
      %p43 = scmp.eq.s32.totalorder %s27, 3
      %p44 = por %p42, %p43
      %p45 = scmp.ne.s32.totalorder %s37, %s40
      %p46 = scmp.eq.s32.totalorder %s27, 0
      %p47 = por %p45, %p46
      %p48 = scmp.ne.s32.totalorder %s37, %s40
      %p49 = scmp.eq.s32.totalorder %s32, 3
      %p50 = por %p48, %p49
      %p51 = scmp.ne.s32.totalorder %s40, %s41
      %p52 = scmp.eq.s32.totalorder %s32, 0
      %p53 = por %p51, %p52
      %p54 = scmp.ne.s32.totalorder %s40, %s41
      %p55 = scmp.eq.s32.totalorder %s33, 3
      %p56 = por %p54, %p55
      %p58 = scmp.ne.s32.totalorder %s41, %s57
      %p59 = scmp.eq.s32.totalorder %s33, 0
      %p60 = por %p58, %p59
      %s62 = sadd.s32 %s61, 1
      %p65 = scmp.eq.s32.totalorder %s27, 3
      %p66 = scmp.ne.s32.totalorder %s61, %s63
      %p67 = scmp.eq.s32.totalorder %s27, 0
      %p68 = por %p66, %p67
      %p69 = scmp.ne.s32.totalorder %s61, %s63
      %p70 = scmp.eq.s32.totalorder %s32, 3
      %p71 = por %p69, %p70
      %p72 = scmp.ne.s32.totalorder %s63, %s64
      %p73 = scmp.eq.s32.totalorder %s32, 0
      %p74 = por %p72, %p73
      %p75 = scmp.ne.s32.totalorder %s63, %s64
      %p76 = scmp.eq.s32.totalorder %s33, 3
      %p77 = por %p75, %p76
      %p79 = scmp.ne.s32.totalorder %s64, %s78
      %p80 = scmp.eq.s32.totalorder %s33, 0
      %p81 = por %p79, %p80
      %s83 = sadd.s32 %s82, 1
      %p86 = scmp.eq.s32.totalorder %s27, 3
      %p87 = scmp.ne.s32.totalorder %s82, %s84
      %p88 = scmp.eq.s32.totalorder %s27, 0
      %p89 = por %p87, %p88
      %p90 = scmp.ne.s32.totalorder %s82, %s84
      %p91 = scmp.eq.s32.totalorder %s32, 3
      %p92 = por %p90, %p91
      %p93 = scmp.ne.s32.totalorder %s84, %s85
      %p94 = scmp.eq.s32.totalorder %s32, 0
      %p95 = por %p93, %p94
      %p96 = scmp.ne.s32.totalorder %s84, %s85
      %p97 = scmp.eq.s32.totalorder %s33, 3
      %p98 = por %p96, %p97
      %p100 = scmp.ne.s32.totalorder %s85, %s99
      %p101 = scmp.eq.s32.totalorder %s33, 0
      %p102 = por %p100, %p101
      %s104 = sadd.s32 %s103, 1
      %p107 = scmp.eq.s32.totalorder %s27, 3
      %p108 = scmp.ne.s32.totalorder %s103, %s105
      %p109 = scmp.eq.s32.totalorder %s27, 0
      %p110 = por %p108, %p109
      %p111 = scmp.ne.s32.totalorder %s103, %s105
      %p112 = scmp.eq.s32.totalorder %s32, 3
      %p113 = por %p111, %p112
      %p114 = scmp.ne.s32.totalorder %s105, %s106
      %p115 = scmp.eq.s32.totalorder %s32, 0
      %p116 = por %p114, %p115
      %p117 = scmp.ne.s32.totalorder %s105, %s106
      %p118 = scmp.eq.s32.totalorder %s33, 3
      %p119 = por %p117, %p118
      %p121 = scmp.ne.s32.totalorder %s106, %s120
      %p122 = scmp.eq.s32.totalorder %s33, 0
      %p123 = por %p121, %p122
      %s125 = sadd.s32 %s124, 1
      %p128 = scmp.eq.s32.totalorder %s27, 3
      %p129 = scmp.ne.s32.totalorder %s124, %s126
      %p130 = scmp.eq.s32.totalorder %s27, 0
      %p131 = por %p129, %p130
      %p132 = scmp.ne.s32.totalorder %s124, %s126
      %p133 = scmp.eq.s32.totalorder %s32, 3
      %p134 = por %p132, %p133
      %p135 = scmp.ne.s32.totalorder %s126, %s127
      %p136 = scmp.eq.s32.totalorder %s32, 0
      %p137 = por %p135, %p136
      %p138 = scmp.ne.s32.totalorder %s126, %s127
      %p139 = scmp.eq.s32.totalorder %s33, 3
      %p140 = por %p138, %p139
      %p142 = scmp.ne.s32.totalorder %s127, %s141
      %p143 = scmp.eq.s32.totalorder %s33, 0
      %p144 = por %p142, %p143
      %s146 = sadd.s32 %s145, 1
      %p149 = scmp.eq.s32.totalorder %s27, 3
      %p150 = scmp.ne.s32.totalorder %s145, %s147
      %p151 = scmp.eq.s32.totalorder %s27, 0
      %p152 = por %p150, %p151
      %p153 = scmp.ne.s32.totalorder %s145, %s147
      %p154 = scmp.eq.s32.totalorder %s32, 3
      %p155 = por %p153, %p154
      %p156 = scmp.ne.s32.totalorder %s147, %s148
      %p157 = scmp.eq.s32.totalorder %s32, 0
      %p158 = por %p156, %p157
      %p159 = scmp.ne.s32.totalorder %s147, %s148
      %p160 = scmp.eq.s32.totalorder %s33, 3
      %p161 = por %p159, %p160
      %p163 = scmp.ne.s32.totalorder %s148, %s162
      %p164 = scmp.eq.s32.totalorder %s33, 0
      %p165 = por %p163, %p164
      %s167 = sadd.s32 %s166, 1
      %p170 = scmp.eq.s32.totalorder %s27, 3
      %p171 = scmp.ne.s32.totalorder %s166, %s168
      %p172 = scmp.eq.s32.totalorder %s27, 0
      %p173 = por %p171, %p172
      %p174 = scmp.ne.s32.totalorder %s166, %s168
      %p175 = scmp.eq.s32.totalorder %s32, 3
      %p176 = por %p174, %p175
      %p177 = scmp.ne.s32.totalorder %s168, %s169
      %p178 = scmp.eq.s32.totalorder %s32, 0
      %p179 = por %p177, %p178
      %p180 = scmp.ne.s32.totalorder %s168, %s169
      %p181 = scmp.eq.s32.totalorder %s33, 3
      %p182 = por %p180, %p181
      %p184 = scmp.ne.s32.totalorder %s169, %s183
      %p185 = scmp.eq.s32.totalorder %s33, 0
      %p186 = por %p184, %p185
      %s187 = ssub.s32 %s27, %s34
      %p188 = scmp.eq.s32.totalorder %s187, 0
      %s190 = sadd.s32 %s189, 1
      %s191 = scalar_select %p188, %s189, %s190
      %p194 = pneg %p188
      %p195 = scmp.eq.s32.totalorder %s27, 3
      %p196 = por %p194, %p195
      %p197 = scmp.ne.s32.totalorder %s189, %s192
      %p198 = scmp.eq.s32.totalorder %s27, 0
      %p199 = por %p197, %p198
      %p200 = scmp.ne.s32.totalorder %s189, %s192
      %p201 = scmp.eq.s32.totalorder %s32, 3
      %p202 = por %p200, %p201
      %p203 = scmp.ne.s32.totalorder %s192, %s193
      %p204 = scmp.eq.s32.totalorder %s32, 0
      %p205 = por %p203, %p204
      %p206 = scmp.ne.s32.totalorder %s192, %s193
      %p207 = scmp.eq.s32.totalorder %s33, 3
      %p208 = por %p206, %p207
      %p210 = scmp.ne.s32.totalorder %s193, %s209
      %p211 = scmp.eq.s32.totalorder %s33, 0
      %p212 = por %p210, %p211
      %s213 = ssub.s32 %s27, %s34
      %p214 = scmp.eq.s32.totalorder %s213, 0
      %s216 = sadd.s32 %s215, 1
      %s217 = scalar_select %p214, %s215, %s216
      %p220 = pneg %p214
      %p221 = scmp.eq.s32.totalorder %s27, 3
      %p222 = por %p220, %p221
      %p223 = scmp.ne.s32.totalorder %s215, %s218
      %p224 = scmp.eq.s32.totalorder %s27, 0
      %p225 = por %p223, %p224
      %p226 = scmp.ne.s32.totalorder %s215, %s218
      %p227 = scmp.eq.s32.totalorder %s32, 3
      %p228 = por %p226, %p227
      %p229 = scmp.ne.s32.totalorder %s218, %s219
      %p230 = scmp.eq.s32.totalorder %s32, 0
      %p231 = por %p229, %p230
      %p232 = scmp.ne.s32.totalorder %s218, %s219
      %p233 = scmp.eq.s32.totalorder %s33, 3
      %p234 = por %p232, %p233
      %p236 = scmp.ne.s32.totalorder %s219, %s235
      %p237 = scmp.eq.s32.totalorder %s33, 0
      %p238 = por %p236, %p237
      %p239 = scmp.le.s32.totalorder 1, %s27
      %p240 = scmp.lt.s32.totalorder %s27, 5
      %p241 = pnand %p239, %p240
      %p242 = pneg %p241
      // Predicated region
      $region9: #{gcn_perturb_forward_batch.1} parent=5 // pred_check
        _
      $region10: #{gcn_perturb_forward_batch.1} parent=5 // pred_check_branch
        %244 = sbr.rel (%p241) target = $region12
      $region11: #{gcn_perturb_forward_batch.1} parent=5 // pred_region
        %s245 = ssub.s32 %s27, 1
        // Predicated region
        $region13: #{gcn_perturb_forward_batch.1} parent=11 // pred_check
          %p246 = pneg %p74
        $region14: #{gcn_perturb_forward_batch.1} parent=11 // pred_check_branch
          %248 = sbr.rel (%p246) target = $region16
        $region15: #{gcn_perturb_forward_batch.1} parent=11 // pred_region
          %s250 = ssub.s32 256, 256
          %251 = vsyncadd [#allocation6], %s250
          %s252 = sshll.u32 [#allocation5], 4
          %s253 = int_to_ptr.vmem [resolvable:$true] %s252
          %258 = dma.hbm_to_vmem [thread:$0]  %s1, 256, %s253, [#allocation6], 128, 128, 8
        $region16: #{gcn_perturb_forward_batch.1} parent=11 // pred_fallthru
          _
        // Predicated region
        $region17: #{gcn_perturb_forward_batch.1} parent=11 // pred_check
          %p259 = pneg %p95
        $region18: #{gcn_perturb_forward_batch.1} parent=11 // pred_check_branch
          %261 = sbr.rel (%p259) target = $region20
        $region19: #{gcn_perturb_forward_batch.1} parent=11 // pred_region
          %s263 = ssub.s32 256, 256
          %264 = vsyncadd [#allocation6], %s263
          %s265 = sshll.u32 [#allocation7], 4
          %s266 = int_to_ptr.vmem [resolvable:$true] %s265
          %271 = dma.hbm_to_vmem [thread:$0]  %s2, 256, %s266, [#allocation6], 128, 128, 8
        $region20: #{gcn_perturb_forward_batch.1} parent=11 // pred_fallthru
          _
        // Predicated region
        $region21: #{gcn_perturb_forward_batch.1} parent=11 // pred_check
          %p272 = pneg %p116
        $region22: #{gcn_perturb_forward_batch.1} parent=11 // pred_check_branch
          %274 = sbr.rel (%p272) target = $region24
        $region23: #{gcn_perturb_forward_batch.1} parent=11 // pred_region
          %s276 = ssub.s32 512, 512
          %277 = vsyncadd [#allocation9], %s276
          %s278 = sshll.u32 [#allocation8], 4
          %s279 = int_to_ptr.vmem [resolvable:$true] %s278
          %284 = dma.hbm_to_vmem [thread:$0]  %s3, 512, %s279, [#allocation9], 128, 128, 8
        $region24: #{gcn_perturb_forward_batch.1} parent=11 // pred_fallthru
          _
        // Predicated region
        $region25: #{gcn_perturb_forward_batch.1} parent=11 // pred_check
          %p285 = pneg %p137
        $region26: #{gcn_perturb_forward_batch.1} parent=11 // pred_check_branch
          %287 = sbr.rel (%p285) target = $region28
        $region27: #{gcn_perturb_forward_batch.1} parent=11 // pred_region
          %s289 = ssub.s32 16, 16
          %290 = vsyncadd [#allocation9], %s289
          %s292 = sshll.u32 [#allocation10], 4
          %s293 = int_to_ptr.vmem [resolvable:$true] %s292
          %295 = dma.hbm_to_vmem [thread:$0]  %s4, 16, %s293, [#allocation9]
        $region28: #{gcn_perturb_forward_batch.1} parent=11 // pred_fallthru
          _
        // Predicated region
        $region29: #{gcn_perturb_forward_batch.1} parent=11 // pred_check
          %p296 = pneg %p158
        $region30: #{gcn_perturb_forward_batch.1} parent=11 // pred_check_branch
          %298 = sbr.rel (%p296) target = $region32
        $region31: #{gcn_perturb_forward_batch.1} parent=11 // pred_region
          %s300 = ssub.s32 512, 512
          %301 = vsyncadd [#allocation12], %s300
          %s302 = sshll.u32 [#allocation11], 4
          %s303 = int_to_ptr.vmem [resolvable:$true] %s302
          %308 = dma.hbm_to_vmem [thread:$0]  %s5, 512, %s303, [#allocation12], 128, 128, 8
        $region32: #{gcn_perturb_forward_batch.1} parent=11 // pred_fallthru
          _
        // Predicated region
        $region33: #{gcn_perturb_forward_batch.1} parent=11 // pred_check
          %p309 = pneg %p179
        $region34: #{gcn_perturb_forward_batch.1} parent=11 // pred_check_branch
          %311 = sbr.rel (%p309) target = $region36
        $region35: #{gcn_perturb_forward_batch.1} parent=11 // pred_region
          %s313 = ssub.s32 16, 16
          %314 = vsyncadd [#allocation12], %s313
          %s316 = sshll.u32 [#allocation13], 4
          %s317 = int_to_ptr.vmem [resolvable:$true] %s316
          %319 = dma.hbm_to_vmem [thread:$0]  %s6, 16, %s317, [#allocation12]
        $region36: #{gcn_perturb_forward_batch.1} parent=11 // pred_fallthru
          _
      $region12: #{gcn_perturb_forward_batch.1} parent=5 // pred_fallthru
        _
      %p320 = scmp.lt.s32.totalorder %s27, 4
      // Predicated region
      $region37: #{gcn_perturb_forward_batch.1} parent=5 // pred_check
        %p321 = pneg %p320
      $region38: #{gcn_perturb_forward_batch.1} parent=5 // pred_check_branch
        %323 = sbr.rel (%p321) target = $region40
      $region39: #{gcn_perturb_forward_batch.1} parent=5 // pred_region
        // Predicated region
        $region41: #{gcn_perturb_forward_batch.1} parent=39 // pred_check
          %p324 = pneg %p47
        $region42: #{gcn_perturb_forward_batch.1} parent=39 // pred_check_branch
          %326 = sbr.rel (%p324) target = $region44
        $region43: #{gcn_perturb_forward_batch.1} parent=39 // pred_region
          %s327 = sand.u32 %s37, 1
          %s328 = scalar_lea.sflag [#allocation3], %s327
          %s329 = sand.u32 %s37, 1
          %s330 = smul.addr %s329, 16
          %s331 = scalar_lea.vmem [#allocation2], %s330
          %s333 = ssub.s32 256, 256
          %334 = vsyncadd %s328, %s333
          %s335 = smul.addr %s27, 2
          %s336 = smul.addr %s335, 128
          %s337 = scalar_lea.hbm %s0, %s336
          %s338 = sshll.u32 %s331, 4
          %s339 = int_to_ptr.vmem [resolvable:$true] %s338
          %344 = dma.hbm_to_vmem [thread:$0]  %s337, 256, %s339, %s328, 128, 128, 8
        $region44: #{gcn_perturb_forward_batch.1} parent=39 // pred_fallthru
          _
      $region40: #{gcn_perturb_forward_batch.1} parent=5 // pred_fallthru
        _
      %p345 = scmp.le.s32.totalorder 1, %s27
      %p346 = scmp.lt.s32.totalorder %s27, 5
      %p347 = pnand %p345, %p346
      %p348 = pneg %p347
      // Predicated region
      $region45: #{gcn_perturb_forward_batch.1} parent=5 // pred_check
        _
      $region46: #{gcn_perturb_forward_batch.1} parent=5 // pred_check_branch
        %350 = sbr.rel (%p347) target = $region48
      $region47: #{gcn_perturb_forward_batch.1} parent=5 // pred_region
        %s351 = ssub.s32 %s27, 1
        %s352 = sand.u32 %s40, 1
        %s353 = scalar_lea.sflag [#allocation3], %s352
        %s354 = sand.u32 %s40, 1
        %s355 = smul.addr %s354, 16
        %s356 = scalar_lea.vmem [#allocation2], %s355
        // Predicated region
        $region49: #{gcn_perturb_forward_batch.1} parent=47 // pred_check
          %p357 = pneg %p53
        $region50: #{gcn_perturb_forward_batch.1} parent=47 // pred_check_branch
          %359 = sbr.rel (%p357) target = $region52
        $region51: #{gcn_perturb_forward_batch.1} parent=47 // pred_region
          %360 = dma.done %s353, 256
        $region52: #{gcn_perturb_forward_batch.1} parent=47 // pred_fallthru
          _
        // Predicated region
        $region53: #{gcn_perturb_forward_batch.1} parent=47 // pred_check
          %p361 = pneg %p74
        $region54: #{gcn_perturb_forward_batch.1} parent=47 // pred_check_branch
          %363 = sbr.rel (%p361) target = $region56
        $region55: #{gcn_perturb_forward_batch.1} parent=47 // pred_region
          %364 = dma.done [#allocation6], 256
        $region56: #{gcn_perturb_forward_batch.1} parent=47 // pred_fallthru
          _
        // Predicated region
        $region57: #{gcn_perturb_forward_batch.1} parent=47 // pred_check
          %p365 = pneg %p95
        $region58: #{gcn_perturb_forward_batch.1} parent=47 // pred_check_branch
          %367 = sbr.rel (%p365) target = $region60
        $region59: #{gcn_perturb_forward_batch.1} parent=47 // pred_region
          %368 = dma.done [#allocation6], 256
        $region60: #{gcn_perturb_forward_batch.1} parent=47 // pred_fallthru
          _
        // Predicated region
        $region61: #{gcn_perturb_forward_batch.1} parent=47 // pred_check
          %p369 = pneg %p116
        $region62: #{gcn_perturb_forward_batch.1} parent=47 // pred_check_branch
          %371 = sbr.rel (%p369) target = $region64
        $region63: #{gcn_perturb_forward_batch.1} parent=47 // pred_region
          %372 = dma.done [#allocation9], 512
        $region64: #{gcn_perturb_forward_batch.1} parent=47 // pred_fallthru
          _
        // Predicated region
        $region65: #{gcn_perturb_forward_batch.1} parent=47 // pred_check
          %p373 = pneg %p137
        $region66: #{gcn_perturb_forward_batch.1} parent=47 // pred_check_branch
          %375 = sbr.rel (%p373) target = $region68
        $region67: #{gcn_perturb_forward_batch.1} parent=47 // pred_region
          %376 = dma.done [#allocation9], 16
        $region68: #{gcn_perturb_forward_batch.1} parent=47 // pred_fallthru
          _
        // Predicated region
        $region69: #{gcn_perturb_forward_batch.1} parent=47 // pred_check
          %p377 = pneg %p158
        $region70: #{gcn_perturb_forward_batch.1} parent=47 // pred_check_branch
          %379 = sbr.rel (%p377) target = $region72
        $region71: #{gcn_perturb_forward_batch.1} parent=47 // pred_region
          %380 = dma.done [#allocation12], 512
        $region72: #{gcn_perturb_forward_batch.1} parent=47 // pred_fallthru
          _
        // Predicated region
        $region73: #{gcn_perturb_forward_batch.1} parent=47 // pred_check
          %p381 = pneg %p179
        $region74: #{gcn_perturb_forward_batch.1} parent=47 // pred_check_branch
          %383 = sbr.rel (%p381) target = $region76
        $region75: #{gcn_perturb_forward_batch.1} parent=47 // pred_region
          %384 = dma.done [#allocation12], 16
        $region76: #{gcn_perturb_forward_batch.1} parent=47 // pred_fallthru
          _
        %s385 = sand.u32 %s40, 1
        %s386 = scalar_lea.sflag [#allocation3], %s385
        %s387 = sand.u32 %s40, 1
        %s388 = smul.addr %s387, 16
        %s389 = scalar_lea.vmem [#allocation2], %s388
        %p390 = pneg %p53
        %p391 = pneg %p50
        %p392 = pneg %p74
        %p393 = pneg %p71
        %p394 = pneg %p95
        %p395 = pneg %p92
        %p396 = pneg %p116
        %p397 = pneg %p113
        %p398 = pneg %p137
        %p399 = pneg %p134
        %p400 = pneg %p158
        %p401 = pneg %p155
        %p402 = pneg %p179
        %p403 = pneg %p176
        %p404 = pneg %p205
        %p405 = pneg %p202
        %s406 = sand.u32 %s192, 1
        %s407 = scalar_lea.sflag [#allocation4], %s406
        %s408 = sand.u32 %s192, 1
        %s409 = smul.addr %s408, 16
        %s410 = scalar_lea.vmem [#allocation14], %s409
        %p411 = pneg %p231
        %p412 = pneg %p228
        %s413 = sand.u32 %s218, 1
        %s414 = scalar_lea.sflag [#allocation16], %s413
        %s415 = sand.u32 %s218, 1
        %s416 = smul.addr %s415, 16
        %s417 = scalar_lea.vmem [#allocation15], %s416
        %v419 = vld [vmem:[%s356] sm:$0xff]
        %v420 = vld [vmem:[%s356 + $0x8] sm:$0xff]
        %v421 = vxor.u32 %v419, 2147483648
        %v422 = vxor.u32 %v420, 2147483648
        %v423 = vmul.f32 %v421, 1.442695
        %v424 = vpow.pop %v423
        %v425 = vmul.f32 %v422, 1.442695
        %v426 = vpow.pop %v425
        %v427 = vadd.f32 %v424, 1.0
        %v428 = vadd.f32 %v426, 1.0
        %v429 = vrcp.pop %v427
        %v430 = vmul.f32 1.0, %v429
        %v431 = vrcp.pop %v428
        %v432 = vmul.f32 1.0, %v431
        %vm433 = vcmask 130048
        %434 = vst.msk [vmem:[%s417] sm:$0xff] %vm433, %v430
        %435 = vst.msk [vmem:[%s417 + $0x8] sm:$0xff] %vm433, %v432
        %v436 = vld [vmem:[#allocation5] sm:$0xff]
        %v437 = vld [vmem:[#allocation5 + $0x8] sm:$0xff]
        %v438 = vmul.f32 %v430, %v436
        %v439 = vmul.f32 %v432, %v437
        %v440 = vsel %vm433, %v438, 0.0
        %441 = vadd.xlane.f32.xlu0 %v440
        %v442 = vpop.xlane.xlu0 %441
        %v443 = vsel %vm433, %v439, 0.0
        %444 = vadd.xlane.f32.xlu0 %v443
        %v445 = vpop.xlane.xlu0 %444
        %v446 = vadd.f32 %v442, 1.0
        %v447 = vadd.f32 %v445, 1.0
        %v448 = vrsqrt.pop %v446
        %v449 = vrsqrt.pop %v447
        %v450 = vpack.c.bf16 %v439, %v438
        %v451 = vld [vmem:[#allocation7] sm:$0xff]
        %v452 = vld [vmem:[#allocation7 + $0x8] sm:$0xff]
        %v453 = vpack.c.bf16 %v452, %v451
        %v454 = vld [vmem:[#allocation8] sm:$0xff]
        %v455 = vld [vmem:[#allocation8 + $0x8] sm:$0xff]
        %v456 = vld [vmem:[#allocation8 + $0x10] sm:$0xff]
        %v457 = vld [vmem:[#allocation8 + $0x18] sm:$0xff]
        %v458 = vpack.c.bf16 %v455, %v454
        %v459 = vpack.c.bf16 %v457, %v456
        %vm460 = vcmask 261120
        %v462 = vsel %vm460, %v453, 0
        %464 = vmatprep.subr.bf16.mxu0 0
        %465 = vmatpush1.bf16.msra.mxu0 %v458
        %466 = vmatprep.subr.bf16.mxu0 0
        %467 = vmatpush1.bf16.msra.mxu0 %v459
        %468 = vmatprep.subr.bf16.mxu0 0
        %469 = vmatpush1.bf16.msra.mxu0 0
        %470 = vmatprep.subr.bf16.mxu0 0
        %471 = vmatpush1.bf16.msra.mxu0 0
        %472 = vmatprep.subr.bf16.mxu0 0
        %473 = vmatpush1.bf16.msra.mxu0 0
        %474 = vmatprep.subr.bf16.mxu0 0
        %475 = vmatpush1.bf16.msra.mxu0 0
        %476 = vmatprep.subr.bf16.mxu0 0
        %477 = vmatpush1.bf16.msra.mxu0 0
        %478 = vmatprep.subr.bf16.mxu0 0
        %479 = vmatpush1.bf16.msra.mxu0 0
        %480 = vmatprep.subr.bf16.mxu0 0
        %481 = vmatpush1.bf16.msra.mxu0 0
        %482 = vmatprep.subr.bf16.mxu0 0
        %483 = vmatpush1.bf16.msra.mxu0 0
        %484 = vmatprep.subr.bf16.mxu0 0
        %485 = vmatpush1.bf16.msra.mxu0 0
        %486 = vmatprep.subr.bf16.mxu0 0
        %487 = vmatpush1.bf16.msra.mxu0 0
        %488 = vmatprep.subr.bf16.mxu0 0
        %489 = vmatpush1.bf16.msra.mxu0 0
        %490 = vmatprep.subr.bf16.mxu0 0
        %491 = vmatpush1.bf16.msra.mxu0 0
        %492 = vmatprep.subr.bf16.mxu0 0
        %493 = vmatpush1.bf16.msra.mxu0 0
        %494 = vmatprep.subr.bf16.mxu0 0
        %495 = vmatpush1.bf16.msra.mxu0 0
        %496 = vmatprep.mubr.bf16.mxu0 0
        %497 = vmatmul.mubr.bf16.gmra.mrb[0].mxu0 %v462
        %v498 = vpop.f32.mrb[0].mxu0
        %v499 = vadd.f32 0.0, %v498
        %v500 = vpop.f32.mrb[0].mxu0
        %v501 = vpop.f32.mrb[0].mxu0
        %v502 = vadd.f32 0.0, %v501
        %v503 = vpop.f32.mrb[0].mxu0
        %504 = vdwg.mxu0
        %v505 = vmul.f32 %v448, %v499
        %v506 = vmul.f32 %v449, %v502
        %v507 = vpack.c.bf16 %v506, %v505
        %v509 = vsel %vm433, %v450, 0
        %511 = vmatprep.subr.bf16.mxu0 0
        %512 = vmatpush1.bf16.msra.mxu0 %v507
        %513 = vmatprep.subr.bf16.mxu0 0
        %514 = vmatpush1.bf16.msra.mxu0 0
        %515 = vmatprep.subr.bf16.mxu0 0
        %516 = vmatpush1.bf16.msra.mxu0 0
        %517 = vmatprep.subr.bf16.mxu0 0
        %518 = vmatpush1.bf16.msra.mxu0 0
        %519 = vmatprep.subr.bf16.mxu0 0
        %520 = vmatpush1.bf16.msra.mxu0 0
        %521 = vmatprep.subr.bf16.mxu0 0
        %522 = vmatpush1.bf16.msra.mxu0 0
        %523 = vmatprep.subr.bf16.mxu0 0
        %524 = vmatpush1.bf16.msra.mxu0 0
        %525 = vmatprep.subr.bf16.mxu0 0
        %526 = vmatpush1.bf16.msra.mxu0 0
        %527 = vmatprep.subr.bf16.mxu0 0
        %528 = vmatpush1.bf16.msra.mxu0 0
        %529 = vmatprep.subr.bf16.mxu0 0
        %530 = vmatpush1.bf16.msra.mxu0 0
        %531 = vmatprep.subr.bf16.mxu0 0
        %532 = vmatpush1.bf16.msra.mxu0 0
        %533 = vmatprep.subr.bf16.mxu0 0
        %534 = vmatpush1.bf16.msra.mxu0 0
        %535 = vmatprep.subr.bf16.mxu0 0
        %536 = vmatpush1.bf16.msra.mxu0 0
        %537 = vmatprep.subr.bf16.mxu0 0
        %538 = vmatpush1.bf16.msra.mxu0 0
        %539 = vmatprep.subr.bf16.mxu0 0
        %540 = vmatpush1.bf16.msra.mxu0 0
        %541 = vmatprep.subr.bf16.mxu0 0
        %542 = vmatpush1.bf16.msra.mxu0 0
        %543 = vmatprep.mubr.bf16.mxu0 0
        %544 = vmatmul.mubr.bf16.gmra.mrb[0].mxu0 %v509
        %v545 = vpop.f32.mrb[0].mxu0
        %v546 = vadd.f32 %v505, %v545
        %v547 = vpop.f32.mrb[0].mxu0
        %v548 = vpop.f32.mrb[0].mxu0
        %v549 = vadd.f32 %v506, %v548
        %v550 = vpop.f32.mrb[0].mxu0
        %551 = vdwg.mxu0
        %v552 = vmul.f32 %v448, %v546
        %v553 = vmul.f32 %v449, %v549
        %v554 = vld [vmem:[#allocation10] sm:$0x1]
        %v556 = vlaneseq
        %v557 = vshrl.u32 %v556, 7
        %v558 = vsub.s32 0, %v557
        %v559 = vrot.slane %v554, %v558
        %v561 = vadd.f32 %v552, %v559
        %v562 = vadd.f32 %v553, %v559
        %v563 = vmax.f32 %v561, 0.0
        %v564 = vmax.f32 %v562, 0.0
        %v565 = vpack.c.bf16 %v564, %v563
        %v566 = vld [vmem:[#allocation11] sm:$0xff]
        %v567 = vld [vmem:[#allocation11 + $0x8] sm:$0xff]
        %v568 = vld [vmem:[#allocation11 + $0x10] sm:$0xff]
        %v569 = vld [vmem:[#allocation11 + $0x18] sm:$0xff]
        %v570 = vpack.c.bf16 %v567, %v566
        %v571 = vpack.c.bf16 %v569, %v568
        %v573 = vsel %vm460, %v565, 0
        %575 = vmatprep.subr.bf16.mxu0 0
        %576 = vmatpush1.bf16.msra.mxu0 %v570
        %577 = vmatprep.subr.bf16.mxu0 0
        %578 = vmatpush1.bf16.msra.mxu0 %v571
        %579 = vmatprep.subr.bf16.mxu0 0
        %580 = vmatpush1.bf16.msra.mxu0 0
        %581 = vmatprep.subr.bf16.mxu0 0
        %582 = vmatpush1.bf16.msra.mxu0 0
        %583 = vmatprep.subr.bf16.mxu0 0
        %584 = vmatpush1.bf16.msra.mxu0 0
        %585 = vmatprep.subr.bf16.mxu0 0
        %586 = vmatpush1.bf16.msra.mxu0 0
        %587 = vmatprep.subr.bf16.mxu0 0
        %588 = vmatpush1.bf16.msra.mxu0 0
        %589 = vmatprep.subr.bf16.mxu0 0
        %590 = vmatpush1.bf16.msra.mxu0 0
        %591 = vmatprep.subr.bf16.mxu0 0
        %592 = vmatpush1.bf16.msra.mxu0 0
        %593 = vmatprep.subr.bf16.mxu0 0
        %594 = vmatpush1.bf16.msra.mxu0 0
        %595 = vmatprep.subr.bf16.mxu0 0
        %596 = vmatpush1.bf16.msra.mxu0 0
        %597 = vmatprep.subr.bf16.mxu0 0
        %598 = vmatpush1.bf16.msra.mxu0 0
        %599 = vmatprep.subr.bf16.mxu0 0
        %600 = vmatpush1.bf16.msra.mxu0 0
        %601 = vmatprep.subr.bf16.mxu0 0
        %602 = vmatpush1.bf16.msra.mxu0 0
        %603 = vmatprep.subr.bf16.mxu0 0
        %604 = vmatpush1.bf16.msra.mxu0 0
        %605 = vmatprep.subr.bf16.mxu0 0
        %606 = vmatpush1.bf16.msra.mxu0 0
        %607 = vmatprep.mubr.bf16.mxu0 0
        %608 = vmatmul.mubr.bf16.gmra.mrb[0].mxu0 %v573
        %v609 = vpop.f32.mrb[0].mxu0
        %v610 = vadd.f32 0.0, %v609
        %v611 = vpop.f32.mrb[0].mxu0
        %v612 = vpop.f32.mrb[0].mxu0
        %v613 = vadd.f32 0.0, %v612
        %v614 = vpop.f32.mrb[0].mxu0
        %615 = vdwg.mxu0
        %v616 = vmul.f32 %v448, %v610
        %v617 = vmul.f32 %v449, %v613
        %v618 = vpack.c.bf16 %v617, %v616
        %619 = vmatprep.subr.bf16.mxu0 0
        %620 = vmatpush1.bf16.msra.mxu0 %v618
        %621 = vmatprep.subr.bf16.mxu0 0
        %622 = vmatpush1.bf16.msra.mxu0 0
        %623 = vmatprep.subr.bf16.mxu0 0
        %624 = vmatpush1.bf16.msra.mxu0 0
        %625 = vmatprep.subr.bf16.mxu0 0
        %626 = vmatpush1.bf16.msra.mxu0 0
        %627 = vmatprep.subr.bf16.mxu0 0
        %628 = vmatpush1.bf16.msra.mxu0 0
        %629 = vmatprep.subr.bf16.mxu0 0
        %630 = vmatpush1.bf16.msra.mxu0 0
        %631 = vmatprep.subr.bf16.mxu0 0
        %632 = vmatpush1.bf16.msra.mxu0 0
        %633 = vmatprep.subr.bf16.mxu0 0
        %634 = vmatpush1.bf16.msra.mxu0 0
        %635 = vmatprep.subr.bf16.mxu0 0
        %636 = vmatpush1.bf16.msra.mxu0 0
        %637 = vmatprep.subr.bf16.mxu0 0
        %638 = vmatpush1.bf16.msra.mxu0 0
        %639 = vmatprep.subr.bf16.mxu0 0
        %640 = vmatpush1.bf16.msra.mxu0 0
        %641 = vmatprep.subr.bf16.mxu0 0
        %642 = vmatpush1.bf16.msra.mxu0 0
        %643 = vmatprep.subr.bf16.mxu0 0
        %644 = vmatpush1.bf16.msra.mxu0 0
        %645 = vmatprep.subr.bf16.mxu0 0
        %646 = vmatpush1.bf16.msra.mxu0 0
        %647 = vmatprep.subr.bf16.mxu0 0
        %648 = vmatpush1.bf16.msra.mxu0 0
        %649 = vmatprep.subr.bf16.mxu0 0
        %650 = vmatpush1.bf16.msra.mxu0 0
        %651 = vmatprep.mubr.bf16.mxu0 0
        %652 = vmatmul.mubr.bf16.gmra.mrb[0].mxu0 %v509
        %v653 = vpop.f32.mrb[0].mxu0
        %v654 = vadd.f32 %v616, %v653
        %v655 = vpop.f32.mrb[0].mxu0
        %v656 = vpop.f32.mrb[0].mxu0
        %v657 = vadd.f32 %v617, %v656
        %v658 = vpop.f32.mrb[0].mxu0
        %659 = vdwg.mxu0
        %v660 = vmul.f32 %v448, %v654
        %v661 = vmul.f32 %v449, %v657
        %v662 = vld [vmem:[#allocation13] sm:$0x1]
        %v664 = vlaneseq
        %v665 = vshrl.u32 %v664, 7
        %v666 = vsub.s32 0, %v665
        %v667 = vrot.slane %v662, %v666
        %v669 = vadd.f32 %v660, %v667
        %v670 = vadd.f32 %v661, %v667
        %671 = vst [vmem:[%s410] sm:$0xff] %v669
        %672 = vst [vmem:[%s410 + $0x8] sm:$0xff] %v670
        %s673 = sand.u32 %s192, 1
        %s674 = scalar_lea.sflag [#allocation4], %s673
        %s675 = sand.u32 %s192, 1
        %s676 = smul.addr %s675, 16
        %s677 = scalar_lea.vmem [#allocation14], %s676
        %s678 = sand.u32 %s218, 1
        %s679 = scalar_lea.sflag [#allocation16], %s678
        %s680 = sand.u32 %s218, 1
        %s681 = smul.addr %s680, 16
        %s682 = scalar_lea.vmem [#allocation15], %s681
        // Predicated region
        $region77: #{gcn_perturb_forward_batch.1} parent=47 // pred_check
          %p683 = pneg %p202
        $region78: #{gcn_perturb_forward_batch.1} parent=47 // pred_check_branch
          %685 = sbr.rel (%p683) target = $region80
        $region79: #{gcn_perturb_forward_batch.1} parent=47 // pred_region
          %s687 = ssub.s32 256, 256
          %688 = vsyncadd %s674, %s687
          %s689 = smul.addr %s32, 2
          %s690 = smul.addr %s689, 128
          %s691 = scalar_lea.hbm %s7, %s690
          %s692 = sshll.u32 %s677, 4
          %s693 = int_to_ptr.vmem [resolvable:$true] %s692
          %698 = dma.vmem_to_hbm [thread:$0]  %s693, 256, %s691, %s674, 128, 128, 8
        $region80: #{gcn_perturb_forward_batch.1} parent=47 // pred_fallthru
          _
        // Predicated region
        $region81: #{gcn_perturb_forward_batch.1} parent=47 // pred_check
          %p699 = pneg %p228
        $region82: #{gcn_perturb_forward_batch.1} parent=47 // pred_check_branch
          %701 = sbr.rel (%p699) target = $region84
        $region83: #{gcn_perturb_forward_batch.1} parent=47 // pred_region
          %s703 = ssub.s32 256, 256
          %704 = vsyncadd %s679, %s703
          %s705 = smul.addr %s32, 2
          %s706 = smul.addr %s705, 128
          %s707 = scalar_lea.hbm %s8, %s706
          %s708 = sshll.u32 %s682, 4
          %s709 = int_to_ptr.vmem [resolvable:$true] %s708
          %714 = dma.vmem_to_hbm [thread:$0]  %s709, 256, %s707, %s679, 128, 128, 8
        $region84: #{gcn_perturb_forward_batch.1} parent=47 // pred_fallthru
          _
      $region48: #{gcn_perturb_forward_batch.1} parent=5 // pred_fallthru
        _
      %p715 = scmp.le.s32.totalorder 2, %s27
      // Predicated region
      $region85: #{gcn_perturb_forward_batch.1} parent=5 // pred_check
        %p716 = pneg %p715
      $region86: #{gcn_perturb_forward_batch.1} parent=5 // pred_check_branch
        %718 = sbr.rel (%p716) target = $region88
      $region87: #{gcn_perturb_forward_batch.1} parent=5 // pred_region
        %s719 = ssub.s32 %s27, 2
        // Predicated region
        $region89: #{gcn_perturb_forward_batch.1} parent=87 // pred_check
          %p720 = pneg %p208
        $region90: #{gcn_perturb_forward_batch.1} parent=87 // pred_check_branch
          %722 = sbr.rel (%p720) target = $region92
        $region91: #{gcn_perturb_forward_batch.1} parent=87 // pred_region
          %s723 = sand.u32 %s193, 1
          %s724 = scalar_lea.sflag [#allocation4], %s723
          %s725 = sand.u32 %s193, 1
          %s726 = smul.addr %s725, 16
          %s727 = scalar_lea.vmem [#allocation14], %s726
          %728 = dma.done %s724, 256
        $region92: #{gcn_perturb_forward_batch.1} parent=87 // pred_fallthru
          _
        // Predicated region
        $region93: #{gcn_perturb_forward_batch.1} parent=87 // pred_check
          %p729 = pneg %p234
        $region94: #{gcn_perturb_forward_batch.1} parent=87 // pred_check_branch
          %731 = sbr.rel (%p729) target = $region96
        $region95: #{gcn_perturb_forward_batch.1} parent=87 // pred_region
          %s732 = sand.u32 %s219, 1
          %s733 = scalar_lea.sflag [#allocation16], %s732
          %s734 = sand.u32 %s219, 1
          %s735 = smul.addr %s734, 16
          %s736 = scalar_lea.vmem [#allocation15], %s735
          %737 = dma.done %s733, 256
        $region96: #{gcn_perturb_forward_batch.1} parent=87 // pred_fallthru
          _
      $region88: #{gcn_perturb_forward_batch.1} parent=5 // pred_fallthru
        _
    $region6: #{gcn_perturb_forward_batch.1} parent=1 // loop_footer
      %s31 = sadd.s32 1, %s27
    $region7: #{gcn_perturb_forward_batch.1} parent=1 // loop_footer_branch
      %26 = sbr.rel target = $region3
    $region8: #{gcn_perturb_forward_batch.1} parent=1 // loop_exit
      _
    %738 = vsyncpa [#allocation3], 1
    %s739 = scalar_lea.sflag [#allocation3], 1
    %740 = vsyncpa %s739, 1
    %741 = vsyncpa [#allocation6], 1
    %742 = vsyncpa [#allocation9], 1
    %743 = vsyncpa [#allocation12], 1
    %744 = vsyncpa [#allocation4], 1
    %s745 = scalar_lea.sflag [#allocation4], 1
    %746 = vsyncpa %s745, 1
    %747 = vsyncpa [#allocation16], 1
    %s748 = scalar_lea.sflag [#allocation16], 1
    %749 = vsyncpa %s748, 1

</llo_original>
